<compile_context>
chip_gen: v5e
topology: v5e:2x2
jax: 0.10.0
libtpu: 0.0.40
codegen_flags: <defaults>
</compile_context>

<pallas_src>
import functools
import math

import jax
import jax.numpy as jnp
from jax.experimental import pallas as pl
from jax.experimental.pallas import tpu as pltpu

LANE = 128
SUBLANE = 8
TARGET_ROWS = 2048  # (2048, 128) f32 tile = 1 MiB per buffer


def _fourier_kernel(coef_ref, x_ref, o_ref, *, num_terms):
    # coef_ref: SMEM (2*num_terms-1,) float32, pre-scaled on host:
    #   every coef includes ln(10); coef[0] additionally includes the 0.5 basis factor.
    # x_ref / o_ref: VMEM (tm, 128) tiles (last grid block may be ragged; Pallas
    # masks the out-of-bounds rows on writeback, so garbage in them is harmless).
    c0 = coef_ref[0]

    if num_terms == 1:
        o_ref[...] = jnp.exp(jnp.zeros(o_ref.shape, jnp.float32) + c0).astype(o_ref.dtype)
        return

    x = x_ref[...].astype(jnp.float32)
    # log10 via a single EUP ln + one VPU multiply.
    xl = jnp.log(x) * jnp.float32(1.0 / math.log(10.0))

    c1 = jnp.cos(xl)          # EUP
    s1 = jnp.sin(xl)          # EUP
    t = c1 + c1               # 2*cos(xl), shared by both Clenshaw recurrences

    N = num_terms - 1
    if N == 1:
        acc = c0 + c1 * coef_ref[1] + s1 * coef_ref[2]
    else:
        # Clenshaw backward recurrence, y_k = a_k + t*y_{k+1} - y_{k+2}:
        #   cos series: a_n = coef[2n-1], sum = c1*y_1 - y_2
        #   sin series: b_n = coef[2n],   sum = s1*y_1
        yc2 = coef_ref[2 * N - 1]               # y_N   (scalar)
        yc1 = coef_ref[2 * N - 3] + t * yc2     # y_{N-1}
        ys2 = coef_ref[2 * N]
        ys1 = coef_ref[2 * N - 2] + t * ys2
        for k in range(N - 2, 0, -1):           # unrolled at trace time
            yc1, yc2 = coef_ref[2 * k - 1] + t * yc1 - yc2, yc1
            ys1, ys2 = coef_ref[2 * k] + t * ys1 - ys2, ys1
        acc = c0 + (c1 * yc1 - yc2) + s1 * ys1

    # 10 ** pred_log == exp(pred_log * ln10); ln10 already folded into the coefs.
    o_ref[...] = jnp.exp(acc).astype(o_ref.dtype)


def fourier_series_fit_forward(x, coefficients, num_terms=8):
    """Pallas implementation of FourierSeriesFit.forward.

    x: any-shape positive float array (log10 is taken, matching the reference).
    coefficients: (2*num_terms - 1, 1) array (as in the PyTorch module).
    """
    num_basis = 2 * num_terms - 1
    assert coefficients.shape == (num_basis, 1)

    # Host-side constant folding: multiply by ln(10) (kernel epilogue becomes exp),
    # and fold the 0.5 constant-basis factor into coef[0].
    ln10 = jnp.float32(math.log(10.0))
    coef_flat = coefficients.reshape(num_basis).astype(jnp.float32) * ln10
    coef_flat = coef_flat.at[0].multiply(jnp.float32(0.5))

    orig_shape = x.shape
    orig_dtype = x.dtype
    flat = x.reshape(-1)
    n = flat.shape[0]

    # Lay the flat array out as (rows, 128); guarantee at least one full (8,128) tile.
    rows = max(pl.cdiv(n, LANE), SUBLANE)
    total = rows * LANE
    pad = total - n
    if pad == 0:
        x2d = flat.reshape(rows, LANE)
    else:
        # Only the tail (< 1024 elements) is padded; log10(1)=0, outputs discarded.
        # TODO(synk): for heavily-unaligned workloads, replace this concat + output
        # slice with memory_space=pl.ANY and manual exact-sized chunk DMAs.
        x2d = jnp.concatenate(
            [flat, jnp.ones((pad,), dtype=orig_dtype)], axis=0
        ).reshape(rows, LANE)

    # Row-block size: at least 2 grid steps whenever splittable so v7x's two
    # TensorCores both get work; cap at TARGET_ROWS for VMEM/pipelining.
    if rows <= SUBLANE:
        tm = SUBLANE
    else:
        half = pl.cdiv(pl.cdiv(rows, 2), SUBLANE) * SUBLANE
        tm = min(TARGET_ROWS, half)
    grid = (pl.cdiv(rows, tm),)   # last block may be ragged; Pallas masks it

    out2d = pl.pallas_call(
        functools.partial(_fourier_kernel, num_terms=num_terms),
        out_shape=jax.ShapeDtypeStruct((rows, LANE), orig_dtype),
        grid=grid,
        in_specs=[
            pl.BlockSpec(memory_space=pltpu.MemorySpace.SMEM),   # coefficients
            pl.BlockSpec((tm, LANE), lambda i: (i, 0)),          # x tile
        ],
        out_specs=pl.BlockSpec((tm, LANE), lambda i: (i, 0)),
        compiler_params=pltpu.CompilerParams(
            dimension_semantics=("parallel",)),
    )(coef_flat, x2d)

    if pad == 0:
        return out2d.reshape(orig_shape)
    return out2d.reshape(-1)[:n].reshape(orig_shape)


def _reference_forward(x, coefficients, num_terms=8):
    # Pure-JAX reference mirroring the PyTorch code.
    xl = jnp.log10(x.reshape(-1).astype(jnp.float32))
    cols = [jnp.ones_like(xl) * 0.5]
    for m in range(1, num_terms):
        cols.append(jnp.cos(m * xl))
        cols.append(jnp.sin(m * xl))
    basis = jnp.stack(cols, axis=-1)                       # (N, num_basis)
    pred_log = basis @ coefficients.astype(jnp.float32)    # (N, 1)
    return (10.0 ** pred_log).reshape(x.shape)


if __name__ == "__main__":
    num_terms = 8
    num_basis = 2 * num_terms - 1

    key = jax.random.PRNGKey(0)
    # Positive inputs (log10 is taken); small NCHW-like shape.
    x = jax.random.uniform(key, (2, 4, 16, 16), dtype=jnp.float32,
                           minval=0.01, maxval=10.0)

    # Deterministic nonzero coefficients (the module inits zeros; nonzero makes
    # the computation non-trivial while staying deterministic).
    coefficients = (0.01 * (jnp.arange(num_basis, dtype=jnp.float32) - 7.0)
                    ).reshape(num_basis, 1)

    out = fourier_series_fit_forward(x, coefficients, num_terms=num_terms)
    out = jax.block_until_ready(out)

    ref = _reference_forward(x, coefficients, num_terms=num_terms)
    assert out.shape == x.shape and out.dtype == x.dtype
    assert jnp.allclose(out, ref, rtol=1e-4, atol=1e-5), "mismatch vs reference"

    print("KERNEL_OK")
</pallas_src>

<mosaic_0001>
module attributes {stable_mosaic.version = 11 : i64} {
  func.func @_fourier_kernel(%arg0: i32, %arg1: memref<15xf32, #tpu.memory_space<smem>>, %arg2: memref<8x128xf32, #tpu.memory_space<vmem>>, %arg3: memref<8x128xf32, #tpu.memory_space<vmem>>) attributes {dimension_semantics = [#tpu.dimension_semantics<parallel>], iteration_bounds = array<i64: 2>, scalar_prefetch = 0 : i64, scratch_operands = 0 : i64, tpu.core_type = #tpu.core_type<tc>, window_params = [{transform_indices = @transform_0, window_bounds = array<i64: 15>}, {transform_indices = @transform_1, window_bounds = array<i64: 8, 128>}, {transform_indices = @transform_2, window_bounds = array<i64: 8, 128>}]} {
    %c0 = arith.constant 0 : index
    %0 = memref.load %arg1[%c0] : memref<15xf32, #tpu.memory_space<smem>>
    %c0_0 = arith.constant 0 : index
    %c0_1 = arith.constant 0 : index
    %1 = vector.load %arg2[%c0_0, %c0_1] : memref<8x128xf32, #tpu.memory_space<vmem>>, vector<8x128xf32>
    %2 = math.log %1 : vector<8x128xf32>
    %cst = arith.constant 0.434294492 : f32
    %3 = vector.broadcast %cst : f32 to vector<8x128xf32>
    %4 = arith.mulf %2, %3 : vector<8x128xf32>
    %5 = math.cos %4 : vector<8x128xf32>
    %6 = math.sin %4 : vector<8x128xf32>
    %7 = arith.addf %5, %5 : vector<8x128xf32>
    %c13 = arith.constant 13 : index
    %8 = memref.load %arg1[%c13] : memref<15xf32, #tpu.memory_space<smem>>
    %c11 = arith.constant 11 : index
    %9 = memref.load %arg1[%c11] : memref<15xf32, #tpu.memory_space<smem>>
    %10 = vector.broadcast %8 : f32 to vector<8x128xf32>
    %11 = arith.mulf %7, %10 : vector<8x128xf32>
    %12 = vector.broadcast %9 : f32 to vector<8x128xf32>
    %13 = arith.addf %12, %11 : vector<8x128xf32>
    %c14 = arith.constant 14 : index
    %14 = memref.load %arg1[%c14] : memref<15xf32, #tpu.memory_space<smem>>
    %c12 = arith.constant 12 : index
    %15 = memref.load %arg1[%c12] : memref<15xf32, #tpu.memory_space<smem>>
    %16 = vector.broadcast %14 : f32 to vector<8x128xf32>
    %17 = arith.mulf %7, %16 : vector<8x128xf32>
    %18 = vector.broadcast %15 : f32 to vector<8x128xf32>
    %19 = arith.addf %18, %17 : vector<8x128xf32>
    %c9 = arith.constant 9 : index
    %20 = memref.load %arg1[%c9] : memref<15xf32, #tpu.memory_space<smem>>
    %21 = arith.mulf %7, %13 : vector<8x128xf32>
    %22 = vector.broadcast %20 : f32 to vector<8x128xf32>
    %23 = arith.addf %22, %21 : vector<8x128xf32>
    %24 = vector.broadcast %8 : f32 to vector<8x128xf32>
    %25 = arith.subf %23, %24 : vector<8x128xf32>
    %c10 = arith.constant 10 : index
    %26 = memref.load %arg1[%c10] : memref<15xf32, #tpu.memory_space<smem>>
    %27 = arith.mulf %7, %19 : vector<8x128xf32>
    %28 = vector.broadcast %26 : f32 to vector<8x128xf32>
    %29 = arith.addf %28, %27 : vector<8x128xf32>
    %30 = vector.broadcast %14 : f32 to vector<8x128xf32>
    %31 = arith.subf %29, %30 : vector<8x128xf32>
    %c7 = arith.constant 7 : index
    %32 = memref.load %arg1[%c7] : memref<15xf32, #tpu.memory_space<smem>>
    %33 = arith.mulf %7, %25 : vector<8x128xf32>
    %34 = vector.broadcast %32 : f32 to vector<8x128xf32>
    %35 = arith.addf %34, %33 : vector<8x128xf32>
    %36 = arith.subf %35, %13 : vector<8x128xf32>
    %c8 = arith.constant 8 : index
    %37 = memref.load %arg1[%c8] : memref<15xf32, #tpu.memory_space<smem>>
    %38 = arith.mulf %7, %31 : vector<8x128xf32>
    %39 = vector.broadcast %37 : f32 to vector<8x128xf32>
    %40 = arith.addf %39, %38 : vector<8x128xf32>
    %41 = arith.subf %40, %19 : vector<8x128xf32>
    %c5 = arith.constant 5 : index
    %42 = memref.load %arg1[%c5] : memref<15xf32, #tpu.memory_space<smem>>
    %43 = arith.mulf %7, %36 : vector<8x128xf32>
    %44 = vector.broadcast %42 : f32 to vector<8x128xf32>
    %45 = arith.addf %44, %43 : vector<8x128xf32>
    %46 = arith.subf %45, %25 : vector<8x128xf32>
    %c6 = arith.constant 6 : index
    %47 = memref.load %arg1[%c6] : memref<15xf32, #tpu.memory_space<smem>>
    %48 = arith.mulf %7, %41 : vector<8x128xf32>
    %49 = vector.broadcast %47 : f32 to vector<8x128xf32>
    %50 = arith.addf %49, %48 : vector<8x128xf32>
    %51 = arith.subf %50, %31 : vector<8x128xf32>
    %c3 = arith.constant 3 : index
    %52 = memref.load %arg1[%c3] : memref<15xf32, #tpu.memory_space<smem>>
    %53 = arith.mulf %7, %46 : vector<8x128xf32>
    %54 = vector.broadcast %52 : f32 to vector<8x128xf32>
    %55 = arith.addf %54, %53 : vector<8x128xf32>
    %56 = arith.subf %55, %36 : vector<8x128xf32>
    %c4 = arith.constant 4 : index
    %57 = memref.load %arg1[%c4] : memref<15xf32, #tpu.memory_space<smem>>
    %58 = arith.mulf %7, %51 : vector<8x128xf32>
    %59 = vector.broadcast %57 : f32 to vector<8x128xf32>
    %60 = arith.addf %59, %58 : vector<8x128xf32>
    %61 = arith.subf %60, %41 : vector<8x128xf32>
    %c1 = arith.constant 1 : index
    %62 = memref.load %arg1[%c1] : memref<15xf32, #tpu.memory_space<smem>>
    %63 = arith.mulf %7, %56 : vector<8x128xf32>
    %64 = vector.broadcast %62 : f32 to vector<8x128xf32>
    %65 = arith.addf %64, %63 : vector<8x128xf32>
    %66 = arith.subf %65, %46 : vector<8x128xf32>
    %c2 = arith.constant 2 : index
    %67 = memref.load %arg1[%c2] : memref<15xf32, #tpu.memory_space<smem>>
    %68 = arith.mulf %7, %61 : vector<8x128xf32>
    %69 = vector.broadcast %67 : f32 to vector<8x128xf32>
    %70 = arith.addf %69, %68 : vector<8x128xf32>
    %71 = arith.subf %70, %51 : vector<8x128xf32>
    %72 = arith.mulf %5, %66 : vector<8x128xf32>
    %73 = arith.subf %72, %56 : vector<8x128xf32>
    %74 = vector.broadcast %0 : f32 to vector<8x128xf32>
    %75 = arith.addf %74, %73 : vector<8x128xf32>
    %76 = arith.mulf %6, %71 : vector<8x128xf32>
    %77 = arith.addf %75, %76 : vector<8x128xf32>
    %78 = math.exp %77 : vector<8x128xf32>
    %c0_2 = arith.constant 0 : index
    %c0_3 = arith.constant 0 : index
    %79 = vector.load %arg3[%c0_2, %c0_3] : memref<8x128xf32, #tpu.memory_space<vmem>>, vector<8x128xf32>
    tpu.vector_store %arg3[%c0_2, %c0_3], %78 {strides = array<i32>} : memref<8x128xf32, #tpu.memory_space<vmem>>, vector<8x128xf32>,
    return
  }
  func.func @transform_0(%arg0: i32) -> i32 {
    %c0_i32 = arith.constant 0 : i32
    %c0_i32_0 = arith.constant 0 : i32
    return %c0_i32 : i32
  }
  func.func @transform_1(%arg0: i32) -> (i32, i32) {
    %c0_i32 = arith.constant 0 : i32
    %c0_i32_0 = arith.constant 0 : i32
    return %arg0, %c0_i32 : i32, i32
  }
  func.func @transform_2(%arg0: i32) -> (i32, i32) {
    %c0_i32 = arith.constant 0 : i32
    %c0_i32_0 = arith.constant 0 : i32
    return %arg0, %c0_i32 : i32, i32
  }
}

</mosaic_0001>

<llo_original>
// kernel: tpu_custom_call.1
$region0: #{tpu_custom_call.1}
  #allocation0 [shape = 'u32[]', space=smem, size = 0x4, offset = 0x4, fixed_abs, tag = 'smem constant byte address 0x4 - core index']
  #allocation1 [shape = 'u32[72,128]{1,0:T(1,128)}', space=vmem, size = 0x9000, scoped, tag = 'internal scratch']
  %s0 = inlined_call_operand.hbm [shape: f32[15], index: 0, kind: input, shape index: {}]
  %s1 = inlined_call_operand.hbm [shape: f32[16,128], index: 1, kind: input, shape index: {}]
  %s2 = inlined_call_operand.hbm [shape: f32[16,128], index: 2, kind: output, shape index: {}]
  %s3 = sld [smem:[#allocation0]]
  $region49: #{tpu_custom_call.1} parent=0
    _
  %s5 = ssub.s32 1, %s3
  %s6 = scalar_select 0, %s5, %s3
  $region1: #{tpu_custom_call.1} parent=0
    #allocation2 [shape = 'u8[512]{0}', space=smem, size = 0x200, scoped, tag = 'input window, operand 0, single buffered']
    #allocation3 [shape = 's32[2]{0}', space=sflag, size = 0x8, scoped, tag = 'scoped memory for tpu_custom_call.1']
    #allocation4 [shape = 's32[2]{0}', space=sflag, size = 0x8, scoped, tag = 'scoped memory for tpu_custom_call.1']
    #allocation5 [shape = 's32[2]{0}', space=sflag, size = 0x8, scoped, tag = 'scoped memory for tpu_custom_call.1']
    #allocation6 [shape = 'u8[8192]{0}', space=vmem, size = 0x2000, scoped, tag = 'input window, operand 1']
    #allocation7 [shape = 'u8[8192]{0}', space=vmem, size = 0x2000, scoped, tag = 'output window, operand 0']
    %7 = vsyncpa [#allocation5], 0
    %8 = vsyncpa [#allocation3], 0
    %s9 = scalar_lea.sflag [#allocation3], 1
    %10 = vsyncpa %s9, 0
    %11 = vsyncpa [#allocation4], 0
    %s12 = scalar_lea.sflag [#allocation4], 1
    %13 = vsyncpa %s12, 0
    loop: start=0, step=1, limit=4
    $region2: #{tpu_custom_call.1} parent=1 // loop_pre_header
      _
    $region3: #{tpu_custom_call.1} parent=1 // loop_header
      %s15 = sphi 0, %s19
      %p16 = scmp.ge.s32.totalorder %s15, 4
      %s23 = sphi 0, %s23
      %s25 = sphi 0, %s23
      %s26 = sphi 0, %s25
      %s40 = sphi 0, %s26
      %s46 = sphi 0, %s48
      %s49 = sphi 0, %s46
      %s50 = sphi 0, %s49
      %s66 = sphi 0, %s50
      %s72 = sphi 0, %s74
      %s75 = sphi 0, %s72
      %s76 = sphi 0, %s75
      %s92 = sphi 0, %s76
    $region4: #{tpu_custom_call.1} parent=1 // loop_header_branch
      %18 = sbr.rel (%p16) target = $region8
    $region5: #{tpu_custom_call.1} parent=1 // loop_body
      %s20 = ssub.s32 %s15, 1
      %s21 = ssub.s32 %s15, 2
      %s22 = sadd.s32 %s15, 1
      %s24 = sadd.s32 %s23, 1
      %p27 = scmp.eq.s32.totalorder %s15, 1
      %p28 = scmp.ne.s32.totalorder %s23, %s25
      %p29 = scmp.eq.s32.totalorder %s15, 0
      %p30 = por %p28, %p29
      %p31 = scmp.ne.s32.totalorder %s23, %s25
      %p32 = scmp.eq.s32.totalorder %s20, 1
      %p33 = por %p31, %p32
      %p34 = scmp.ne.s32.totalorder %s25, %s26
      %p35 = scmp.eq.s32.totalorder %s20, 0
      %p36 = por %p34, %p35
      %p37 = scmp.ne.s32.totalorder %s25, %s26
      %p38 = scmp.eq.s32.totalorder %s21, 1
      %p39 = por %p37, %p38
      %p41 = scmp.ne.s32.totalorder %s26, %s40
      %p42 = scmp.eq.s32.totalorder %s21, 0
      %p43 = por %p41, %p42
      %s44 = ssub.s32 %s15, %s22
      %p45 = scmp.eq.s32.totalorder %s44, 0
      %s47 = sadd.s32 %s46, 1
      %s48 = scalar_select %p45, %s46, %s47
      %p51 = pneg %p45
      %p52 = scmp.eq.s32.totalorder %s15, 1
      %p53 = por %p51, %p52
      %p54 = scmp.ne.s32.totalorder %s46, %s49
      %p55 = scmp.eq.s32.totalorder %s15, 0
      %p56 = por %p54, %p55
      %p57 = scmp.ne.s32.totalorder %s46, %s49
      %p58 = scmp.eq.s32.totalorder %s20, 1
      %p59 = por %p57, %p58
      %p60 = scmp.ne.s32.totalorder %s49, %s50
      %p61 = scmp.eq.s32.totalorder %s20, 0
      %p62 = por %p60, %p61
      %p63 = scmp.ne.s32.totalorder %s49, %s50
      %p64 = scmp.eq.s32.totalorder %s21, 1
      %p65 = por %p63, %p64
      %p67 = scmp.ne.s32.totalorder %s50, %s66
      %p68 = scmp.eq.s32.totalorder %s21, 0
      %p69 = por %p67, %p68
      %s70 = ssub.s32 %s15, %s22
      %p71 = scmp.eq.s32.totalorder %s70, 0
      %s73 = sadd.s32 %s72, 1
      %s74 = scalar_select %p71, %s72, %s73
      %p77 = pneg %p71
      %p78 = scmp.eq.s32.totalorder %s15, 1
      %p79 = por %p77, %p78
      %p80 = scmp.ne.s32.totalorder %s72, %s75
      %p81 = scmp.eq.s32.totalorder %s15, 0
      %p82 = por %p80, %p81
      %p83 = scmp.ne.s32.totalorder %s72, %s75
      %p84 = scmp.eq.s32.totalorder %s20, 1
      %p85 = por %p83, %p84
      %p86 = scmp.ne.s32.totalorder %s75, %s76
      %p87 = scmp.eq.s32.totalorder %s20, 0
      %p88 = por %p86, %p87
      %p89 = scmp.ne.s32.totalorder %s75, %s76
      %p90 = scmp.eq.s32.totalorder %s21, 1
      %p91 = por %p89, %p90
      %p93 = scmp.ne.s32.totalorder %s76, %s92
      %p94 = scmp.eq.s32.totalorder %s21, 0
      %p95 = por %p93, %p94
      %p96 = scmp.le.s32.totalorder 1, %s15
      %p97 = scmp.lt.s32.totalorder %s15, 3
      %p98 = pnand %p96, %p97
      %p99 = pneg %p98
      // Predicated region
      $region9: #{tpu_custom_call.1} parent=5 // pred_check
        _
      $region10: #{tpu_custom_call.1} parent=5 // pred_check_branch
        %101 = sbr.rel (%p98) target = $region12
      $region11: #{tpu_custom_call.1} parent=5 // pred_region
        %s102 = ssub.s32 %s15, 1
        // Predicated region
        $region13: #{tpu_custom_call.1} parent=11 // pred_check
          %p103 = pneg %p36
        $region14: #{tpu_custom_call.1} parent=11 // pred_check_branch
          %105 = sbr.rel (%p103) target = $region16
        $region15: #{tpu_custom_call.1} parent=11 // pred_region
          %107 = vsyncadd [#allocation5], 0
          %s109 = sshll.u32 %s0, 4
          %s110 = int_to_ptr.hbm [resolvable:$true] %s109
          %112 = dma.hbm_to_smem %s110, 16, [#allocation2], [#allocation5]
        $region16: #{tpu_custom_call.1} parent=11 // pred_fallthru
          _
      $region12: #{tpu_custom_call.1} parent=5 // pred_fallthru
        _
      %p113 = scmp.lt.s32.totalorder %s15, 2
      // Predicated region
      $region17: #{tpu_custom_call.1} parent=5 // pred_check
        %p114 = pneg %p113
      $region18: #{tpu_custom_call.1} parent=5 // pred_check_branch
        %116 = sbr.rel (%p114) target = $region20
      $region19: #{tpu_custom_call.1} parent=5 // pred_region
        // Predicated region
        $region21: #{tpu_custom_call.1} parent=19 // pred_check
          %p117 = pneg %p56
        $region22: #{tpu_custom_call.1} parent=19 // pred_check_branch
          %119 = sbr.rel (%p117) target = $region24
        $region23: #{tpu_custom_call.1} parent=19 // pred_region
          %s120 = sand.u32 %s46, 1
          %s121 = scalar_lea.sflag [#allocation3], %s120
          %s122 = sand.u32 %s46, 1
          %s123 = smul.addr %s122, 8
          %s124 = scalar_lea.vmem [#allocation6], %s123
          %126 = vsyncadd %s121, 0
          %s127 = smul.addr %s15, 8
          %s128 = scalar_lea.hbm %s1, %s127
          %s130 = sshll.u32 %s128, 4
          %s131 = int_to_ptr.hbm [resolvable:$true] %s130
          %s132 = sshll.u32 %s124, 4
          %s133 = int_to_ptr.vmem [resolvable:$true] %s132
          %135 = dma.hbm_to_vmem [thread:$0]  %s131, 128, %s133, %s121
        $region24: #{tpu_custom_call.1} parent=19 // pred_fallthru
          _
      $region20: #{tpu_custom_call.1} parent=5 // pred_fallthru
        _
      %p136 = scmp.le.s32.totalorder 1, %s15
      %p137 = scmp.lt.s32.totalorder %s15, 3
      %p138 = pnand %p136, %p137
      %p139 = pneg %p138
      // Predicated region
      $region25: #{tpu_custom_call.1} parent=5 // pred_check
        _
      $region26: #{tpu_custom_call.1} parent=5 // pred_check_branch
        %141 = sbr.rel (%p138) target = $region28
      $region27: #{tpu_custom_call.1} parent=5 // pred_region
        %s142 = ssub.s32 %s15, 1
        // Predicated region
        $region29: #{tpu_custom_call.1} parent=27 // pred_check
          %p143 = pneg %p36
        $region30: #{tpu_custom_call.1} parent=27 // pred_check_branch
          %145 = sbr.rel (%p143) target = $region32
        $region31: #{tpu_custom_call.1} parent=27 // pred_region
          %147 = dma.done [#allocation5], 16
        $region32: #{tpu_custom_call.1} parent=27 // pred_fallthru
          _
        %s148 = sand.u32 %s49, 1
        %s149 = scalar_lea.sflag [#allocation3], %s148
        %s150 = sand.u32 %s49, 1
        %s151 = smul.addr %s150, 8
        %s152 = scalar_lea.vmem [#allocation6], %s151
        // Predicated region
        $region33: #{tpu_custom_call.1} parent=27 // pred_check
          %p153 = pneg %p62
        $region34: #{tpu_custom_call.1} parent=27 // pred_check_branch
          %155 = sbr.rel (%p153) target = $region36
        $region35: #{tpu_custom_call.1} parent=27 // pred_region
          %157 = dma.done %s149, 128
        $region36: #{tpu_custom_call.1} parent=27 // pred_fallthru
          _
        %158 = sfence
        %p159 = pneg %p36
        %p160 = pneg %p33
        %s161 = sand.u32 %s49, 1
        %s162 = scalar_lea.sflag [#allocation3], %s161
        %s163 = sand.u32 %s49, 1
        %s164 = smul.addr %s163, 8
        %s165 = scalar_lea.vmem [#allocation6], %s164
        %p166 = pneg %p62
        %p167 = pneg %p59
        %p168 = pneg %p88
        %p169 = pneg %p85
        %s170 = sand.u32 %s75, 1
        %s171 = scalar_lea.sflag [#allocation4], %s170
        %s172 = sand.u32 %s75, 1
        %s173 = smul.addr %s172, 8
        %s174 = scalar_lea.vmem [#allocation7], %s173
        %s175 = sld [smem:[#allocation2]]
        %v176 = vld [vmem:[%s152] sm:$0xff]
        %v177 = vlog2.pop %v176
        %v178 = vmul.f32 %v177, 0.6931472
        %v179 = vmul.f32 %v178, 0.4342945
        %v180 = vand.u32 2147483647, %v179
        %vm181 = vcmp.le.f32.partialorder %v180, 0.7853982
        %vm182 = vcmp.lt.s32.totalorder %v179, 0
        %v183 = vand.u32 %v179, 2139095040
        %v184 = vshrl.u32 %v183, 23
        %v185 = vsub.s32 %v184, 127
        %v186 = vand.u32 2147483647, %v179
        %v187 = vand.u32 %v186, 8388607
        %v188 = vor.u32 %v187, 8388608
        %v189 = vsub.s32 0, %v188
        %v190 = vadd.s32 %v185, 1
        %vm191 = vcmp.gt.s32.totalorder %v190, 0
        %v192 = vsel %vm191, %v190, 0
        %v193 = vshrl.u32 %v192, 5
        %v194 = vand.u32 %v192, 31
        %v195 = vsub.s32 32, %v194
        %v196 = vshrl.u32 683565275, %v195
        %v197 = vshll.u32 683565275, %v194
        %v198 = vshrl.u32 2475754826, %v195
        %v199 = vor.u32 %v197, %v198
        %v200 = vshll.u32 2475754826, %v194
        %v201 = vshrl.u32 2131351028, %v195
        %v202 = vor.u32 %v200, %v201
        %v203 = vshll.u32 2131351028, %v194
        %v204 = vshrl.u32 2102212464, %v195
        %v205 = vor.u32 %v203, %v204
        %v206 = vshll.u32 2102212464, %v194
        %v207 = vshrl.u32 920167782, %v195
        %v208 = vor.u32 %v206, %v207
        %v209 = vshll.u32 920167782, %v194
        %v210 = vshrl.u32 1326507024, %v195
        %v211 = vor.u32 %v209, %v210
        %vm212 = vcmp.lt.s32.totalorder %v193, 1
        %vm213 = vcmp.lt.s32.totalorder %v193, 2
        %vm214 = vcmp.lt.s32.totalorder %v193, 3
        %vm215 = vcmp.lt.s32.totalorder %v193, 4
        %v216 = vsel %vm212, %v196, %v199
        %v217 = vsel %vm215, %v205, 2102212464
        %v218 = vsel %vm214, %v202, %v217
        %v219 = vsel %vm213, %v216, %v218
        %v220 = vsel %vm212, %v199, %v202
        %v221 = vsel %vm215, %v208, 920167782
        %v222 = vsel %vm214, %v205, %v221
        %v223 = vsel %vm213, %v220, %v222
        %v224 = vsel %vm212, %v202, %v205
        %v225 = vsel %vm215, %v211, 1326507024
        %v226 = vsel %vm214, %v208, %v225
        %v227 = vsel %vm213, %v224, %v226
        %v228 = vshll.u32 %v188, 8
        %v229 = vand.u32 %v228, 65535
        %v230 = vshrl.u32 %v228, 16
        %v231 = vand.u32 %v227, 65535
        %v232 = vshrl.u32 %v227, 16
        %v233 = vmul.u32 %v229, %v231
        %v234 = vmul.u32 %v229, %v232
        %v235 = vmul.u32 %v230, %v231
        %v236 = vmul.u32 %v230, %v232
        %v237 = vshll.u32 %v234, 16
        %v238 = vshrl.u32 %v234, 16
        %v239 = vshll.u32 %v235, 16
        %v240 = vshrl.u32 %v235, 16
        %vm241 = vc.u32 %v233, %v237
        %v242 = vsel %vm241, 1, 0
        %v243 = vadd.s32 %v233, %v237
        %v244 = vadd.s32 %v236, %v242
        %vm245 = vc.u32 %v243, %v239
        %v246 = vsel %vm245, 1, 0
        %v247 = vadd.s32 %v243, %v239
        %v248 = vadd.s32 %v244, %v246
        %v249 = vadd.s32 %v248, %v238
        %v250 = vadd.s32 %v249, %v240
        %v251 = vand.u32 %v228, 65535
        %v252 = vshrl.u32 %v228, 16
        %v253 = vand.u32 %v223, 65535
        %v254 = vshrl.u32 %v223, 16
        %v255 = vmul.u32 %v251, %v253
        %v256 = vmul.u32 %v251, %v254
        %v257 = vmul.u32 %v252, %v253
        %v258 = vmul.u32 %v252, %v254
        %v259 = vshll.u32 %v256, 16
        %v260 = vshrl.u32 %v256, 16
        %v261 = vshll.u32 %v257, 16
        %v262 = vshrl.u32 %v257, 16
        %vm263 = vc.u32 %v255, %v259
        %v264 = vsel %vm263, 1, 0
        %v265 = vadd.s32 %v255, %v259
        %v266 = vadd.s32 %v258, %v264
        %vm267 = vc.u32 %v265, %v261
        %v268 = vsel %vm267, 1, 0
        %v269 = vadd.s32 %v265, %v261
        %v270 = vadd.s32 %v266, %v268
        %v271 = vadd.s32 %v270, %v260
        %v272 = vadd.s32 %v271, %v262
        %v273 = vmul.u32 %v228, %v219
        %v274 = vadd.s32 %v250, %v269
        %vm275 = vc.u32 %v250, %v269
        %v276 = vadd.s32 %v272, 1
        %v277 = vsel %vm275, %v276, %v272
        %v278 = vadd.s32 %v273, %v277
        %v279 = vadd.s32 %v278, 536870912
        %v280 = vshrl.u32 %v279, 30
        %v281 = vshll.u32 %v280, 30
        %v282 = vsub.s32 %v278, %v281
        %vm283 = vcmp.lt.s32.totalorder %v282, 0
        %v284 = vsub.s32 0, %v282
        %v285 = vsel %vm283, %v284, %v282
        %v286 = vclz %v285
        %v287 = vsub.s32 %v286, 2
        %vm288 = vcmp.gt.s32.totalorder 0, %v287
        %v289 = vsel %vm288, 0, %v287
        %v290 = vsub.s32 32, %v289
        %v291 = vshll.u32 %v282, %v289
        %v292 = vshrl.u32 %v274, %v290
        %v293 = vor.u32 %v291, %v292
        %v294 = vsub.s32 4294967266, %v289
        %v295 = vadd.s32 %v294, 127
        %v296 = vshll.u32 %v295, 23
        %v297 = vor.u32 4788187, %v296
        %v298 = vand.u32 2147483647, %v297
        %v300 = vcvt.s32.f32 %v293
        %v301 = vmul.f32 %v300, %v298
        %v302 = vxor.u32 %v301, 2147483648
        %v303 = vsel %vm182, %v302, %v301
        %v304 = vsub.s32 4, %v280
        %v305 = vsel %vm182, %v304, %v280
        %v306 = vsel %vm181, %v179, %v303
        %v307 = vsel %vm181, 0, %v305
        %v308 = vmul.f32 %v306, %v306
        %v309 = vmul.f32 %v308, -0.001358992
        %v310 = vadd.f32 %v309, 0.041655596
        %v311 = vmul.f32 %v308, %v310
        %v312 = vadd.f32 %v311, -0.4999988
        %v313 = vmul.f32 %v308, %v312
        %v314 = vadd.f32 1.0, %v313
        %v315 = vmul.f32 %v306, %v306
        %v316 = vmul.f32 %v315, -0.00019511016
        %v317 = vadd.f32 %v316, 0.008332121
        %v318 = vmul.f32 %v315, %v317
        %v319 = vadd.f32 %v318, -0.16666654
        %v320 = vmul.f32 %v315, %v319
        %v321 = vadd.f32 %v320, 1.0
        %v322 = vmul.f32 %v321, %v306
        %vm323 = vweird.f32 %v179
        %v324 = vand.u32 %v307, 3
        %vm325 = vcmp.lt.s32.totalorder %v324, 2
        %vm326 = vcmp.eq.s32.totalorder %v324, 0
        %v327 = vxor.u32 %v322, 2147483648
        %v328 = vsel %vm326, %v314, %v327
        %vm329 = vcmp.eq.s32.totalorder %v324, 2
        %v330 = vxor.u32 %v314, 2147483648
        %v331 = vsel %vm329, %v330, %v322
        %v332 = vsel %vm325, %v328, %v331
        %v333 = vsel %vm323, nan, %v332
        %v334 = vand.u32 2147483647, %v179
        %vm335 = vcmp.le.f32.partialorder %v334, 0.7853982
        %vm336 = vcmp.lt.s32.totalorder %v179, 0
        %v337 = vand.u32 %v179, 2139095040
        %v338 = vshrl.u32 %v337, 23
        %v339 = vsub.s32 %v338, 127
        %v340 = vand.u32 2147483647, %v179
        %v341 = vand.u32 %v340, 8388607
        %v342 = vor.u32 %v341, 8388608
        %v343 = vsub.s32 0, %v342
        %v344 = vadd.s32 %v339, 1
        %vm345 = vcmp.gt.s32.totalorder %v344, 0
        %v346 = vsel %vm345, %v344, 0
        %v347 = vshrl.u32 %v346, 5
        %v348 = vand.u32 %v346, 31
        %v349 = vsub.s32 32, %v348
        %v350 = vshrl.u32 683565275, %v349
        %v351 = vshll.u32 683565275, %v348
        %v352 = vshrl.u32 2475754826, %v349
        %v353 = vor.u32 %v351, %v352
        %v354 = vshll.u32 2475754826, %v348
        %v355 = vshrl.u32 2131351028, %v349
        %v356 = vor.u32 %v354, %v355
        %v357 = vshll.u32 2131351028, %v348
        %v358 = vshrl.u32 2102212464, %v349
        %v359 = vor.u32 %v357, %v358
        %v360 = vshll.u32 2102212464, %v348
        %v361 = vshrl.u32 920167782, %v349
        %v362 = vor.u32 %v360, %v361
        %v363 = vshll.u32 920167782, %v348
        %v364 = vshrl.u32 1326507024, %v349
        %v365 = vor.u32 %v363, %v364
        %vm366 = vcmp.lt.s32.totalorder %v347, 1
        %vm367 = vcmp.lt.s32.totalorder %v347, 2
        %vm368 = vcmp.lt.s32.totalorder %v347, 3
        %vm369 = vcmp.lt.s32.totalorder %v347, 4
        %v370 = vsel %vm366, %v350, %v353
        %v371 = vsel %vm369, %v359, 2102212464
        %v372 = vsel %vm368, %v356, %v371
        %v373 = vsel %vm367, %v370, %v372
        %v374 = vsel %vm366, %v353, %v356
        %v375 = vsel %vm369, %v362, 920167782
        %v376 = vsel %vm368, %v359, %v375
        %v377 = vsel %vm367, %v374, %v376
        %v378 = vsel %vm366, %v356, %v359
        %v379 = vsel %vm369, %v365, 1326507024
        %v380 = vsel %vm368, %v362, %v379
        %v381 = vsel %vm367, %v378, %v380
        %v382 = vshll.u32 %v342, 8
        %v383 = vand.u32 %v382, 65535
        %v384 = vshrl.u32 %v382, 16
        %v385 = vand.u32 %v381, 65535
        %v386 = vshrl.u32 %v381, 16
        %v387 = vmul.u32 %v383, %v385
        %v388 = vmul.u32 %v383, %v386
        %v389 = vmul.u32 %v384, %v385
        %v390 = vmul.u32 %v384, %v386
        %v391 = vshll.u32 %v388, 16
        %v392 = vshrl.u32 %v388, 16
        %v393 = vshll.u32 %v389, 16
        %v394 = vshrl.u32 %v389, 16
        %vm395 = vc.u32 %v387, %v391
        %v396 = vsel %vm395, 1, 0
        %v397 = vadd.s32 %v387, %v391
        %v398 = vadd.s32 %v390, %v396
        %vm399 = vc.u32 %v397, %v393
        %v400 = vsel %vm399, 1, 0
        %v401 = vadd.s32 %v397, %v393
        %v402 = vadd.s32 %v398, %v400
        %v403 = vadd.s32 %v402, %v392
        %v404 = vadd.s32 %v403, %v394
        %v405 = vand.u32 %v382, 65535
        %v406 = vshrl.u32 %v382, 16
        %v407 = vand.u32 %v377, 65535
        %v408 = vshrl.u32 %v377, 16
        %v409 = vmul.u32 %v405, %v407
        %v410 = vmul.u32 %v405, %v408
        %v411 = vmul.u32 %v406, %v407
        %v412 = vmul.u32 %v406, %v408
        %v413 = vshll.u32 %v410, 16
        %v414 = vshrl.u32 %v410, 16
        %v415 = vshll.u32 %v411, 16
        %v416 = vshrl.u32 %v411, 16
        %vm417 = vc.u32 %v409, %v413
        %v418 = vsel %vm417, 1, 0
        %v419 = vadd.s32 %v409, %v413
        %v420 = vadd.s32 %v412, %v418
        %vm421 = vc.u32 %v419, %v415
        %v422 = vsel %vm421, 1, 0
        %v423 = vadd.s32 %v419, %v415
        %v424 = vadd.s32 %v420, %v422
        %v425 = vadd.s32 %v424, %v414
        %v426 = vadd.s32 %v425, %v416
        %v427 = vmul.u32 %v382, %v373
        %v428 = vadd.s32 %v404, %v423
        %vm429 = vc.u32 %v404, %v423
        %v430 = vadd.s32 %v426, 1
        %v431 = vsel %vm429, %v430, %v426
        %v432 = vadd.s32 %v427, %v431
        %v433 = vadd.s32 %v432, 536870912
        %v434 = vshrl.u32 %v433, 30
        %v435 = vshll.u32 %v434, 30
        %v436 = vsub.s32 %v432, %v435
        %vm437 = vcmp.lt.s32.totalorder %v436, 0
        %v438 = vsub.s32 0, %v436
        %v439 = vsel %vm437, %v438, %v436
        %v440 = vclz %v439
        %v441 = vsub.s32 %v440, 2
        %vm442 = vcmp.gt.s32.totalorder 0, %v441
        %v443 = vsel %vm442, 0, %v441
        %v444 = vsub.s32 32, %v443
        %v445 = vshll.u32 %v436, %v443
        %v446 = vshrl.u32 %v428, %v444
        %v447 = vor.u32 %v445, %v446
        %v448 = vsub.s32 4294967266, %v443
        %v449 = vadd.s32 %v448, 127
        %v450 = vshll.u32 %v449, 23
        %v451 = vor.u32 4788187, %v450
        %v452 = vand.u32 2147483647, %v451
        %v454 = vcvt.s32.f32 %v447
        %v455 = vmul.f32 %v454, %v452
        %v456 = vxor.u32 %v455, 2147483648
        %v457 = vsel %vm336, %v456, %v455
        %v458 = vsub.s32 4, %v434
        %v459 = vsel %vm336, %v458, %v434
        %v460 = vsel %vm335, %v179, %v457
        %v461 = vsel %vm335, 0, %v459
        %v462 = vmul.f32 %v460, %v460
        %v463 = vmul.f32 %v462, -0.001358992
        %v464 = vadd.f32 %v463, 0.041655596
        %v465 = vmul.f32 %v462, %v464
        %v466 = vadd.f32 %v465, -0.4999988
        %v467 = vmul.f32 %v462, %v466
        %v468 = vadd.f32 1.0, %v467
        %v469 = vmul.f32 %v460, %v460
        %v470 = vmul.f32 %v469, -0.00019511016
        %v471 = vadd.f32 %v470, 0.008332121
        %v472 = vmul.f32 %v469, %v471
        %v473 = vadd.f32 %v472, -0.16666654
        %v474 = vmul.f32 %v469, %v473
        %v475 = vadd.f32 %v474, 1.0
        %v476 = vmul.f32 %v475, %v460
        %vm477 = vweird.f32 %v179
        %v478 = vadd.s32 %v461, 3
        %v479 = vand.u32 %v478, 3
        %vm480 = vcmp.lt.s32.totalorder %v479, 2
        %vm481 = vcmp.eq.s32.totalorder %v479, 0
        %v482 = vxor.u32 %v476, 2147483648
        %v483 = vsel %vm481, %v468, %v482
        %vm484 = vcmp.eq.s32.totalorder %v479, 2
        %v485 = vxor.u32 %v468, 2147483648
        %v486 = vsel %vm484, %v485, %v476
        %v487 = vsel %vm480, %v483, %v486
        %v488 = vsel %vm477, nan, %v487
        %v489 = vadd.f32 %v333, %v333
        %s490 = sld [smem:[#allocation2 + $0xd]]
        %s491 = sld [smem:[#allocation2 + $0xb]]
        %v492 = vstv %s490
        %v493 = vmul.f32 %v489, %v492
        %v494 = vstv %s491
        %v495 = vadd.f32 %v494, %v493
        %s496 = sld [smem:[#allocation2 + $0xe]]
        %s497 = sld [smem:[#allocation2 + $0xc]]
        %v498 = vstv %s496
        %v499 = vmul.f32 %v489, %v498
        %v500 = vstv %s497
        %v501 = vadd.f32 %v500, %v499
        %s502 = sld [smem:[#allocation2 + $0x9]]
        %v503 = vmul.f32 %v489, %v495
        %v504 = vstv %s502
        %v505 = vadd.f32 %v504, %v503
        %v506 = vsub.f32 %v505, %v492
        %s507 = sld [smem:[#allocation2 + $0xa]]
        %v508 = vmul.f32 %v489, %v501
        %v509 = vstv %s507
        %v510 = vadd.f32 %v509, %v508
        %v511 = vsub.f32 %v510, %v498
        %s512 = sld [smem:[#allocation2 + $0x7]]
        %v513 = vmul.f32 %v489, %v506
        %v514 = vstv %s512
        %v515 = vadd.f32 %v514, %v513
        %v516 = vsub.f32 %v515, %v495
        %s517 = sld [smem:[#allocation2 + $0x8]]
        %v518 = vmul.f32 %v489, %v511
        %v519 = vstv %s517
        %v520 = vadd.f32 %v519, %v518
        %v521 = vsub.f32 %v520, %v501
        %s522 = sld [smem:[#allocation2 + $0x5]]
        %v523 = vmul.f32 %v489, %v516
        %v524 = vstv %s522
        %v525 = vadd.f32 %v524, %v523
        %v526 = vsub.f32 %v525, %v506
        %s527 = sld [smem:[#allocation2 + $0x6]]
        %v528 = vmul.f32 %v489, %v521
        %v529 = vstv %s527
        %v530 = vadd.f32 %v529, %v528
        %v531 = vsub.f32 %v530, %v511
        %s532 = sld [smem:[#allocation2 + $0x3]]
        %v533 = vmul.f32 %v489, %v526
        %v534 = vstv %s532
        %v535 = vadd.f32 %v534, %v533
        %v536 = vsub.f32 %v535, %v516
        %s537 = sld [smem:[#allocation2 + $0x4]]
        %v538 = vmul.f32 %v489, %v531
        %v539 = vstv %s537
        %v540 = vadd.f32 %v539, %v538
        %v541 = vsub.f32 %v540, %v521
        %s542 = sld [smem:[#allocation2 + $0x1]]
        %v543 = vmul.f32 %v489, %v536
        %v544 = vstv %s542
        %v545 = vadd.f32 %v544, %v543
        %v546 = vsub.f32 %v545, %v526
        %s547 = sld [smem:[#allocation2 + $0x2]]
        %v548 = vmul.f32 %v489, %v541
        %v549 = vstv %s547
        %v550 = vadd.f32 %v549, %v548
        %v551 = vsub.f32 %v550, %v531
        %v552 = vmul.f32 %v333, %v546
        %v553 = vsub.f32 %v552, %v536
        %v554 = vstv %s175
        %v555 = vadd.f32 %v554, %v553
        %v556 = vmul.f32 %v488, %v551
        %v557 = vadd.f32 %v555, %v556
        %v558 = vmul.f32 %v557, 1.442695
        %v559 = vpow.pop %v558
        %560 = vst [vmem:[%s174] sm:$0xff] %v559
        %s561 = sand.u32 %s75, 1
        %s562 = scalar_lea.sflag [#allocation4], %s561
        %s563 = sand.u32 %s75, 1
        %s564 = smul.addr %s563, 8
        %s565 = scalar_lea.vmem [#allocation7], %s564
        // Predicated region
        $region37: #{tpu_custom_call.1} parent=27 // pred_check
          %p566 = pneg %p85
        $region38: #{tpu_custom_call.1} parent=27 // pred_check_branch
          %568 = sbr.rel (%p566) target = $region40
        $region39: #{tpu_custom_call.1} parent=27 // pred_region
          %570 = vsyncadd %s562, 0
          %s571 = smul.addr %s20, 8
          %s572 = scalar_lea.hbm %s2, %s571
          %s574 = sshll.u32 %s565, 4
          %s575 = int_to_ptr.vmem [resolvable:$true] %s574
          %s576 = sshll.u32 %s572, 4
          %s577 = int_to_ptr.hbm [resolvable:$true] %s576
          %579 = dma.vmem_to_hbm [thread:$0]  %s575, 128, %s577, %s562
        $region40: #{tpu_custom_call.1} parent=27 // pred_fallthru
          _
      $region28: #{tpu_custom_call.1} parent=5 // pred_fallthru
        _
      %p580 = scmp.le.s32.totalorder 2, %s15
      // Predicated region
      $region41: #{tpu_custom_call.1} parent=5 // pred_check
        %p581 = pneg %p580
      $region42: #{tpu_custom_call.1} parent=5 // pred_check_branch
        %583 = sbr.rel (%p581) target = $region44
      $region43: #{tpu_custom_call.1} parent=5 // pred_region
        %s584 = ssub.s32 %s15, 2
        // Predicated region
        $region45: #{tpu_custom_call.1} parent=43 // pred_check
          %p585 = pneg %p91
        $region46: #{tpu_custom_call.1} parent=43 // pred_check_branch
          %587 = sbr.rel (%p585) target = $region48
        $region47: #{tpu_custom_call.1} parent=43 // pred_region
          %s588 = sand.u32 %s76, 1
          %s589 = scalar_lea.sflag [#allocation4], %s588
          %s590 = sand.u32 %s76, 1
          %s591 = smul.addr %s590, 8
          %s592 = scalar_lea.vmem [#allocation7], %s591
          %594 = dma.done %s589, 128
        $region48: #{tpu_custom_call.1} parent=43 // pred_fallthru
          _
      $region44: #{tpu_custom_call.1} parent=5 // pred_fallthru
        _
    $region6: #{tpu_custom_call.1} parent=1 // loop_footer
      %s19 = sadd.s32 1, %s15
    $region7: #{tpu_custom_call.1} parent=1 // loop_footer_branch
      %14 = sbr.rel target = $region3
    $region8: #{tpu_custom_call.1} parent=1 // loop_exit
      _
    %595 = vsyncpa [#allocation3], 1
    %s596 = scalar_lea.sflag [#allocation3], 1
    %597 = vsyncpa %s596, 1
    %598 = vsyncpa [#allocation4], 1
    %s599 = scalar_lea.sflag [#allocation4], 1
    %600 = vsyncpa %s599, 1
    %601 = vsyncpa [#allocation5], 1
    %s602 = scalar_lea.sflag [#allocation5], 1
    %603 = vsyncpa %s602, 1

</llo_original>
